<compile_context>
chip_gen: v7x
topology: tpu7x:2x2x1
jax: 0.10.0
libtpu: 0.0.40
codegen_flags: <defaults>
</compile_context>

<pallas_src>
import math
import jax
import jax.numpy as jnp
from jax.experimental import pallas as pl
from jax.experimental.pallas import tpu as pltpu

# ---- small config consistent with DGPTConfig ----
B, T, C = 2, 8, 32          # batch, block_size (seq), n_embd
BT = B * T                  # flattened batch*seq rows = 16
N_HEAD = 4
N_WORKERS = 2
NH_LOCAL = N_HEAD // N_WORKERS       # heads per worker = 2
HD = C // N_HEAD                     # head dim = 8
C_LOC = C // N_WORKERS               # per-worker attn width = 16
FF_LOC = 4 * C // N_WORKERS          # per-worker ffn width = 64
FF_TOT = N_WORKERS * FF_LOC          # fused ffn width = 128 (full lane width)
LN_EPS = 1e-5
NEG_BIG = -1e30

# column offsets inside the fused bf16 weight slab (C rows x 384 cols)
_OFF_QKV = 0                 # (C, 3*C)   fused q|k|v projection
_OFF_PO = 3 * C              # (C, C)     fused attn c_proj (head/worker sum folded)
_OFF_FC = 4 * C              # (C, 128)   fused mlp c_fc
_OFF_P2 = 4 * C + FF_TOT     # (C, 128)   fused mlp c_proj, stored transposed
_W_COLS = 4 * C + 2 * FF_TOT  # 384


def _gelu_exact(x):
    # nn.GELU() default = exact erf-based GELU (keep in f32: VPU/EUP work)
    return 0.5 * x * (1.0 + jax.lax.erf(x * (1.0 / math.sqrt(2.0))))


def block_kernel(x_ref, mask_ref, vec_ref, w_ref, o_ref):
    x = x_ref[...]                      # (BT, C) f32
    mask = mask_ref[...]                # (BT, BT) f32 additive mask (0 / -1e30)
    vec = vec_ref[...]                  # (8, 128) f32  LN params + biases slab
    w = w_ref[...]                      # (C, 384) bf16 fused weight slab

    ln1w = vec[0:1, 0:C]
    ln1b = vec[1:2, 0:C]
    ln2w = vec[2:3, 0:C]
    ln2b = vec[3:4, 0:C]
    b_qkv = vec[4:5, 0:3 * C]           # (1, 96)
    b_po = vec[5:6, 0:C]                # (1, 32)  pre-summed over workers (== all_reduce)
    b_fc = vec[6:7, 0:FF_TOT]           # (1, 128)
    b_p2 = vec[7:8, 0:C]                # (1, 32)  pre-summed over workers

    def layernorm(h, wt, bs):
        mu = jnp.mean(h, axis=-1, keepdims=True)
        var = jnp.mean((h - mu) ** 2, axis=-1, keepdims=True)
        return (h - mu) * jax.lax.rsqrt(var + LN_EPS) * wt + bs

    # ----- attention branch: x + attn(ln_1(x)) -----
    h = layernorm(x, ln1w, ln1b)                                   # (BT, C) f32

    # one fused 96-lane QKV projection (covers both workers / all heads)
    qkv = jnp.dot(h.astype(jnp.bfloat16), w[:, _OFF_QKV:_OFF_QKV + 3 * C],
                  preferred_element_type=jnp.float32) + b_qkv      # (BT, 96) f32

    scale = 1.0 / math.sqrt(HD)
    y_heads = []
    for hh in range(N_HEAD):            # static unroll; MXU passes per head are inherent
        q = qkv[:, hh * HD:(hh + 1) * HD].astype(jnp.bfloat16)          # (BT, HD)
        k = qkv[:, C + hh * HD:C + (hh + 1) * HD].astype(jnp.bfloat16)
        v = qkv[:, 2 * C + hh * HD:2 * C + (hh + 1) * HD].astype(jnp.bfloat16)
        s = jax.lax.dot_general(q, k, (((1,), (1,)), ((), ())),
                                preferred_element_type=jnp.float32)      # (BT, BT)
        s = s * scale + mask
        s = s - jnp.max(s, axis=-1, keepdims=True)
        p = jnp.exp(s)
        p = p * pl.reciprocal(jnp.sum(p, axis=-1, keepdims=True), approx=True)
        # attn_dropout p = 0.0 -> identity
        y_heads.append(jnp.dot(p.astype(jnp.bfloat16), v,
                               preferred_element_type=jnp.float32))      # (BT, HD)

    y_cat = jnp.concatenate(y_heads, axis=1)                        # (BT, C) global-head order
    # fused attn c_proj: head/worker sum (the all_reduce) folds into this contraction
    attn_out = jnp.dot(y_cat.astype(jnp.bfloat16), w[:, _OFF_PO:_OFF_PO + C],
                       preferred_element_type=jnp.float32) + b_po   # (BT, C)
    # resid_dropout p = 0.0 -> identity

    x1 = x + attn_out

    # ----- MLP branch: x1 + mlp(ln_2(x1)) -----
    h2 = layernorm(x1, ln2w, ln2b)
    f = jnp.dot(h2.astype(jnp.bfloat16), w[:, _OFF_FC:_OFF_FC + FF_TOT],
                preferred_element_type=jnp.float32) + b_fc          # (BT, 128)
    f = _gelu_exact(f)                                              # f32 full-lane GELU
    # mlp c_proj stored transposed -> native trans_b dot; worker sum folds in
    mlp_out = jax.lax.dot_general(f.astype(jnp.bfloat16), w[:, _OFF_P2:_OFF_P2 + FF_TOT],
                                  (((1,), (1,)), ((), ())),
                                  preferred_element_type=jnp.float32) + b_p2
    # dropout p = 0.0 -> identity

    o_ref[...] = x1 + mlp_out


def pack_params(params):
    """Repack PyTorch-style per-worker params into two fused slabs + the static mask.

    Runs ONCE at init (outside the jitted forward): fuses the two tensor-parallel
    workers (the simulated all_reduce becomes a contraction / bias pre-sum),
    pre-casts matmul weights to bf16, and consolidates everything into
    one (8,128) f32 vreg-tile slab + one (C,384) bf16 weight slab.
    """
    (ln1w, ln1b, wqkv, bqkv, wpo, bpo, ln2w, ln2b, wfc, bfc, wp2, bp2) = params

    # fused QKV weight (C, 3C): columns [q | k | v], each block ordered by global head
    wq = jnp.concatenate([wqkv[w][:, 0:C_LOC] for w in range(N_WORKERS)], axis=1)
    wk = jnp.concatenate([wqkv[w][:, C_LOC:2 * C_LOC] for w in range(N_WORKERS)], axis=1)
    wv = jnp.concatenate([wqkv[w][:, 2 * C_LOC:3 * C_LOC] for w in range(N_WORKERS)], axis=1)
    w_qkv = jnp.concatenate([wq, wk, wv], axis=1)                       # (C, 3C)

    bq = jnp.concatenate([bqkv[w][0:C_LOC] for w in range(N_WORKERS)])
    bk = jnp.concatenate([bqkv[w][C_LOC:2 * C_LOC] for w in range(N_WORKERS)])
    bv = jnp.concatenate([bqkv[w][2 * C_LOC:3 * C_LOC] for w in range(N_WORKERS)])
    b_qkv = jnp.concatenate([bq, bk, bv])                               # (3C,)

    # attn c_proj: concat worker rows -> (C, C); head/worker sum folds into contraction
    w_po = jnp.concatenate([wpo[w] for w in range(N_WORKERS)], axis=0)  # (C, C)
    b_po = jnp.sum(bpo, axis=0)                                         # (C,)  == all_reduce

    # MLP: fuse the two workers into single wide matmuls; sum c_proj biases
    w_fc = jnp.concatenate([wfc[w] for w in range(N_WORKERS)], axis=1)  # (C, 128)
    b_fc = jnp.concatenate([bfc[w] for w in range(N_WORKERS)])          # (128,)
    w_p2t = jnp.concatenate([wp2[w] for w in range(N_WORKERS)], axis=0).T  # (C, 128) == c_proj.T
    b_p2 = jnp.sum(bp2, axis=0)                                          # (C,)

    # single bf16 weight slab (one DMA, halves weight bytes / VMEM footprint)
    w_slab = jnp.concatenate([w_qkv, w_po, w_fc, w_p2t], axis=1).astype(jnp.bfloat16)
    assert w_slab.shape == (C, _W_COLS)

    # single f32 LN/bias slab == exactly one (8,128) vreg tile (one DMA)
    vec = jnp.zeros((8, 128), jnp.float32)
    vec = vec.at[0, 0:C].set(ln1w.reshape(C))
    vec = vec.at[1, 0:C].set(ln1b.reshape(C))
    vec = vec.at[2, 0:C].set(ln2w.reshape(C))
    vec = vec.at[3, 0:C].set(ln2b.reshape(C))
    vec = vec.at[4, 0:3 * C].set(b_qkv)
    vec = vec.at[5, 0:C].set(b_po)
    vec = vec.at[6, 0:FF_TOT].set(b_fc)
    vec = vec.at[7, 0:C].set(b_p2)

    # static block-diagonal-causal additive mask over the flattened (B*T) axis
    row = jnp.arange(BT)[:, None]
    col = jnp.arange(BT)[None, :]
    allowed = (row // T == col // T) & ((row % T) >= (col % T))
    mask = jnp.where(allowed, 0.0, NEG_BIG).astype(jnp.float32)          # (BT, BT)

    return vec, w_slab, mask


@jax.jit
def block_forward(x, packed):
    vec, w_slab, mask = packed
    x2d = x.reshape(BT, C)                                    # fold batch into sublanes

    vmem = pl.BlockSpec(memory_space=pltpu.MemorySpace.VMEM)  # whole array in VMEM
    out2d = pl.pallas_call(
        block_kernel,
        out_shape=jax.ShapeDtypeStruct((BT, C), jnp.float32),
        in_specs=[vmem, vmem, vmem, vmem],
        out_specs=vmem,
    )(x2d, mask, vec, w_slab)
    return out2d.reshape(B, T, C)


# ---- pure-JAX reference (mirrors the PyTorch forward exactly, f32 throughout) ----
def block_reference(x, params):
    (ln1w, ln1b, wqkv, bqkv, wpo, bpo, ln2w, ln2b, wfc, bfc, wp2, bp2) = params

    def ln(h, w, b):
        mu = jnp.mean(h, axis=-1, keepdims=True)
        var = jnp.mean((h - mu) ** 2, axis=-1, keepdims=True)
        return (h - mu) / jnp.sqrt(var + LN_EPS) * w[0] + b[0]

    h = ln(x, ln1w, ln1b)
    attn_out = jnp.zeros_like(x)
    for w in range(N_WORKERS):
        qkv = h @ wqkv[w] + bqkv[w]
        q, k, v = jnp.split(qkv, 3, axis=-1)
        q = q.reshape(B, T, NH_LOCAL, HD).transpose(0, 2, 1, 3)
        k = k.reshape(B, T, NH_LOCAL, HD).transpose(0, 2, 1, 3)
        v = v.reshape(B, T, NH_LOCAL, HD).transpose(0, 2, 1, 3)
        att = (q @ jnp.swapaxes(k, -2, -1)) / math.sqrt(HD)
        mask = jnp.tril(jnp.ones((T, T), bool))
        att = jnp.where(mask, att, -jnp.inf)
        att = jax.nn.softmax(att, axis=-1)
        y = (att @ v).transpose(0, 2, 1, 3).reshape(B, T, C_LOC)
        attn_out = attn_out + y @ wpo[w] + bpo[w]
    x1 = x + attn_out
    h2 = ln(x1, ln2w, ln2b)
    mlp_out = jnp.zeros_like(x)
    for w in range(N_WORKERS):
        f = jax.nn.gelu(h2 @ wfc[w] + bfc[w], approximate=False)
        mlp_out = mlp_out + f @ wp2[w] + bp2[w]
    return x1 + mlp_out


if __name__ == "__main__":
    key = jax.random.PRNGKey(0)
    keys = jax.random.split(key, 10)

    def normal(k, shape, scale=0.02):
        return (scale * jax.random.normal(k, shape)).astype(jnp.float32)

    x = normal(keys[0], (B, T, C), scale=1.0)

    ln1w = jnp.ones((1, C), jnp.float32)
    ln1b = jnp.zeros((1, C), jnp.float32)
    wqkv = normal(keys[1], (N_WORKERS, C, 3 * C_LOC))      # per-worker c_attn (in, out)
    bqkv = normal(keys[2], (N_WORKERS, 3 * C_LOC))
    wpo = normal(keys[3], (N_WORKERS, C_LOC, C))           # per-worker attn c_proj
    bpo = normal(keys[4], (N_WORKERS, C))
    ln2w = jnp.ones((1, C), jnp.float32)
    ln2b = jnp.zeros((1, C), jnp.float32)
    wfc = normal(keys[5], (N_WORKERS, C, FF_LOC))          # per-worker c_fc
    bfc = normal(keys[6], (N_WORKERS, FF_LOC))
    wp2 = normal(keys[7], (N_WORKERS, FF_LOC, C))          # per-worker mlp c_proj
    bp2 = normal(keys[8], (N_WORKERS, C))

    params = (ln1w, ln1b, wqkv, bqkv, wpo, bpo, ln2w, ln2b, wfc, bfc, wp2, bp2)

    # pack ONCE at init (hoisted out of the per-call path)
    packed = jax.block_until_ready(pack_params(params))

    out = block_forward(x, packed)
    out = jax.block_until_ready(out)

    ref = block_reference(x, params)
    # tolerance covers bf16 MXU inputs + pl.reciprocal(approx=True) in the softmax
    if not jnp.allclose(out, ref, rtol=2e-2, atol=5e-3):
        raise AssertionError("Pallas kernel mismatch vs reference")

    # TODO(synk): the real ReduceController.all_reduce is a cross-host collective;
    # here both worker shards are computed in-kernel and their sum is folded into
    # the fused c_proj contractions / pre-summed biases (mathematically identical).
    print("KERNEL_OK")
</pallas_src>

<mosaic_0001>
module attributes {stable_mosaic.version = 11 : i64} {
  func.func @block_kernel(%arg0: memref<16x32xf32, #tpu.memory_space<vmem>>, %arg1: memref<16x16xf32, #tpu.memory_space<vmem>>, %arg2: memref<8x128xf32, #tpu.memory_space<vmem>>, %arg3: memref<32x384xbf16, #tpu.memory_space<vmem>>, %arg4: memref<16x32xf32, #tpu.memory_space<vmem>>) attributes {dimension_semantics = [], scalar_prefetch = 0 : i64, scratch_operands = 0 : i64, tpu.core_type = #tpu.core_type<tc>} {
    %c0 = arith.constant 0 : index
    %c0_0 = arith.constant 0 : index
    %0 = vector.load %arg0[%c0, %c0_0] : memref<16x32xf32, #tpu.memory_space<vmem>>, vector<16x32xf32>
    %c0_1 = arith.constant 0 : index
    %c0_2 = arith.constant 0 : index
    %1 = vector.load %arg1[%c0_1, %c0_2] : memref<16x16xf32, #tpu.memory_space<vmem>>, vector<16x16xf32>
    %c0_3 = arith.constant 0 : index
    %c0_4 = arith.constant 0 : index
    %2 = vector.load %arg2[%c0_3, %c0_4] : memref<8x128xf32, #tpu.memory_space<vmem>>, vector<8x128xf32>
    %c0_5 = arith.constant 0 : index
    %c0_6 = arith.constant 0 : index
    %3 = vector.load %arg3[%c0_5, %c0_6] : memref<32x384xbf16, #tpu.memory_space<vmem>>, vector<32x384xbf16>
    %4 = vector.extract_strided_slice %2 {offsets = [0, 0], sizes = [1, 32], strides = [1, 1]} : vector<8x128xf32> to vector<1x32xf32>
    %5 = vector.extract_strided_slice %2 {offsets = [1, 0], sizes = [1, 32], strides = [1, 1]} : vector<8x128xf32> to vector<1x32xf32>
    %6 = vector.extract_strided_slice %2 {offsets = [2, 0], sizes = [1, 32], strides = [1, 1]} : vector<8x128xf32> to vector<1x32xf32>
    %7 = vector.extract_strided_slice %2 {offsets = [3, 0], sizes = [1, 32], strides = [1, 1]} : vector<8x128xf32> to vector<1x32xf32>
    %8 = vector.extract_strided_slice %2 {offsets = [4, 0], sizes = [1, 96], strides = [1, 1]} : vector<8x128xf32> to vector<1x96xf32>
    %9 = vector.extract_strided_slice %2 {offsets = [5, 0], sizes = [1, 32], strides = [1, 1]} : vector<8x128xf32> to vector<1x32xf32>
    %10 = vector.extract_strided_slice %2 {offsets = [6, 0], sizes = [1, 128], strides = [1, 1]} : vector<8x128xf32> to vector<1x128xf32>
    %11 = vector.extract_strided_slice %2 {offsets = [7, 0], sizes = [1, 32], strides = [1, 1]} : vector<8x128xf32> to vector<1x32xf32>
    %cst = arith.constant dense<0.000000e+00> : vector<16xf32>
    %12 = vector.multi_reduction <add>, %0, %cst [1] : vector<16x32xf32> to vector<16xf32>
    %13 = vector.shape_cast %12 : vector<16xf32> to vector<16x1xf32>
    %cst_7 = arith.constant 3.200000e+01 : f32
    %14 = vector.broadcast %cst_7 : f32 to vector<16x1xf32>
    %15 = arith.divf %13, %14 : vector<16x1xf32>
    %16 = vector.broadcast %15 : vector<16x1xf32> to vector<16x32xf32>
    %17 = arith.subf %0, %16 : vector<16x32xf32>
    %18 = arith.mulf %17, %17 : vector<16x32xf32>
    %cst_8 = arith.constant dense<0.000000e+00> : vector<16xf32>
    %19 = vector.multi_reduction <add>, %18, %cst_8 [1] : vector<16x32xf32> to vector<16xf32>
    %20 = vector.shape_cast %19 : vector<16xf32> to vector<16x1xf32>
    %cst_9 = arith.constant 3.200000e+01 : f32
    %21 = vector.broadcast %cst_9 : f32 to vector<16x1xf32>
    %22 = arith.divf %20, %21 : vector<16x1xf32>
    %23 = vector.broadcast %15 : vector<16x1xf32> to vector<16x32xf32>
    %24 = arith.subf %0, %23 : vector<16x32xf32>
    %cst_10 = arith.constant 9.99999974E-6 : f32
    %25 = vector.broadcast %cst_10 : f32 to vector<16x1xf32>
    %26 = arith.addf %22, %25 : vector<16x1xf32>
    %27 = math.rsqrt %26 : vector<16x1xf32>
    %28 = vector.broadcast %27 : vector<16x1xf32> to vector<16x32xf32>
    %29 = arith.mulf %24, %28 : vector<16x32xf32>
    %30 = vector.broadcast %4 : vector<1x32xf32> to vector<16x32xf32>
    %31 = arith.mulf %29, %30 : vector<16x32xf32>
    %32 = vector.broadcast %5 : vector<1x32xf32> to vector<16x32xf32>
    %33 = arith.addf %31, %32 : vector<16x32xf32>
    %34 = arith.truncf %33 : vector<16x32xf32> to vector<16x32xbf16>
    %35 = vector.extract_strided_slice %3 {offsets = [0, 0], sizes = [32, 96], strides = [1, 1]} : vector<32x384xbf16> to vector<32x96xbf16>
    %cst_11 = arith.constant dense<0.000000e+00> : vector<16x96xf32>
    %36 = tpu.matmul %34, %35, %cst_11 {dimension_numbers = #tpu.dot_dimension_numbers<[1], [0], [0], [1], [0, 0, 1, 1], [], []>} : vector<16x32xbf16>, vector<32x96xbf16>, vector<16x96xf32> -> vector<16x96xf32>
    %37 = vector.broadcast %8 : vector<1x96xf32> to vector<16x96xf32>
    %38 = arith.addf %36, %37 : vector<16x96xf32>
    %39 = vector.extract_strided_slice %38 {offsets = [0, 0], sizes = [16, 8], strides = [1, 1]} : vector<16x96xf32> to vector<16x8xf32>
    %40 = arith.truncf %39 : vector<16x8xf32> to vector<16x8xbf16>
    %41 = vector.extract_strided_slice %38 {offsets = [0, 32], sizes = [16, 8], strides = [1, 1]} : vector<16x96xf32> to vector<16x8xf32>
    %42 = arith.truncf %41 : vector<16x8xf32> to vector<16x8xbf16>
    %43 = vector.extract_strided_slice %38 {offsets = [0, 64], sizes = [16, 8], strides = [1, 1]} : vector<16x96xf32> to vector<16x8xf32>
    %44 = arith.truncf %43 : vector<16x8xf32> to vector<16x8xbf16>
    %cst_12 = arith.constant dense<0.000000e+00> : vector<16x16xf32>
    %45 = tpu.matmul %40, %42, %cst_12 {dimension_numbers = #tpu.dot_dimension_numbers<[1], [1], [0], [0], [0, 0, 1, 0], [], []>} : vector<16x8xbf16>, vector<16x8xbf16>, vector<16x16xf32> -> vector<16x16xf32>
    %cst_13 = arith.constant 0.353553385 : f32
    %46 = vector.broadcast %cst_13 : f32 to vector<16x16xf32>
    %47 = arith.mulf %45, %46 : vector<16x16xf32>
    %48 = arith.addf %47, %1 : vector<16x16xf32>
    %cst_14 = arith.constant dense<0xFF800000> : vector<16xf32>
    %49 = vector.multi_reduction <maximumf>, %48, %cst_14 [1] : vector<16x16xf32> to vector<16xf32>
    %50 = vector.shape_cast %49 : vector<16xf32> to vector<16x1xf32>
    %51 = vector.broadcast %50 : vector<16x1xf32> to vector<16x16xf32>
    %52 = arith.subf %48, %51 : vector<16x16xf32>
    %53 = math.exp %52 : vector<16x16xf32>
    %cst_15 = arith.constant dense<0.000000e+00> : vector<16xf32>
    %54 = vector.multi_reduction <add>, %53, %cst_15 [1] : vector<16x16xf32> to vector<16xf32>
    %55 = vector.shape_cast %54 : vector<16xf32> to vector<16x1xf32>
    %56 = tpu.reciprocal %55 {approx = true} : vector<16x1xf32> -> vector<16x1xf32>
    %57 = vector.broadcast %56 : vector<16x1xf32> to vector<16x16xf32>
    %58 = arith.mulf %53, %57 : vector<16x16xf32>
    %59 = arith.truncf %58 : vector<16x16xf32> to vector<16x16xbf16>
    %cst_16 = arith.constant dense<0.000000e+00> : vector<16x8xf32>
    %60 = tpu.matmul %59, %44, %cst_16 {dimension_numbers = #tpu.dot_dimension_numbers<[1], [0], [0], [1], [0, 0, 1, 1], [], []>} : vector<16x16xbf16>, vector<16x8xbf16>, vector<16x8xf32> -> vector<16x8xf32>
    %61 = vector.extract_strided_slice %38 {offsets = [0, 8], sizes = [16, 8], strides = [1, 1]} : vector<16x96xf32> to vector<16x8xf32>
    %62 = arith.truncf %61 : vector<16x8xf32> to vector<16x8xbf16>
    %63 = vector.extract_strided_slice %38 {offsets = [0, 40], sizes = [16, 8], strides = [1, 1]} : vector<16x96xf32> to vector<16x8xf32>
    %64 = arith.truncf %63 : vector<16x8xf32> to vector<16x8xbf16>
    %65 = vector.extract_strided_slice %38 {offsets = [0, 72], sizes = [16, 8], strides = [1, 1]} : vector<16x96xf32> to vector<16x8xf32>
    %66 = arith.truncf %65 : vector<16x8xf32> to vector<16x8xbf16>
    %cst_17 = arith.constant dense<0.000000e+00> : vector<16x16xf32>
    %67 = tpu.matmul %62, %64, %cst_17 {dimension_numbers = #tpu.dot_dimension_numbers<[1], [1], [0], [0], [0, 0, 1, 0], [], []>} : vector<16x8xbf16>, vector<16x8xbf16>, vector<16x16xf32> -> vector<16x16xf32>
    %cst_18 = arith.constant 0.353553385 : f32
    %68 = vector.broadcast %cst_18 : f32 to vector<16x16xf32>
    %69 = arith.mulf %67, %68 : vector<16x16xf32>
    %70 = arith.addf %69, %1 : vector<16x16xf32>
    %cst_19 = arith.constant dense<0xFF800000> : vector<16xf32>
    %71 = vector.multi_reduction <maximumf>, %70, %cst_19 [1] : vector<16x16xf32> to vector<16xf32>
    %72 = vector.shape_cast %71 : vector<16xf32> to vector<16x1xf32>
    %73 = vector.broadcast %72 : vector<16x1xf32> to vector<16x16xf32>
    %74 = arith.subf %70, %73 : vector<16x16xf32>
    %75 = math.exp %74 : vector<16x16xf32>
    %cst_20 = arith.constant dense<0.000000e+00> : vector<16xf32>
    %76 = vector.multi_reduction <add>, %75, %cst_20 [1] : vector<16x16xf32> to vector<16xf32>
    %77 = vector.shape_cast %76 : vector<16xf32> to vector<16x1xf32>
    %78 = tpu.reciprocal %77 {approx = true} : vector<16x1xf32> -> vector<16x1xf32>
    %79 = vector.broadcast %78 : vector<16x1xf32> to vector<16x16xf32>
    %80 = arith.mulf %75, %79 : vector<16x16xf32>
    %81 = arith.truncf %80 : vector<16x16xf32> to vector<16x16xbf16>
    %cst_21 = arith.constant dense<0.000000e+00> : vector<16x8xf32>
    %82 = tpu.matmul %81, %66, %cst_21 {dimension_numbers = #tpu.dot_dimension_numbers<[1], [0], [0], [1], [0, 0, 1, 1], [], []>} : vector<16x16xbf16>, vector<16x8xbf16>, vector<16x8xf32> -> vector<16x8xf32>
    %83 = vector.extract_strided_slice %38 {offsets = [0, 16], sizes = [16, 8], strides = [1, 1]} : vector<16x96xf32> to vector<16x8xf32>
    %84 = arith.truncf %83 : vector<16x8xf32> to vector<16x8xbf16>
    %85 = vector.extract_strided_slice %38 {offsets = [0, 48], sizes = [16, 8], strides = [1, 1]} : vector<16x96xf32> to vector<16x8xf32>
    %86 = arith.truncf %85 : vector<16x8xf32> to vector<16x8xbf16>
    %87 = vector.extract_strided_slice %38 {offsets = [0, 80], sizes = [16, 8], strides = [1, 1]} : vector<16x96xf32> to vector<16x8xf32>
    %88 = arith.truncf %87 : vector<16x8xf32> to vector<16x8xbf16>
    %cst_22 = arith.constant dense<0.000000e+00> : vector<16x16xf32>
    %89 = tpu.matmul %84, %86, %cst_22 {dimension_numbers = #tpu.dot_dimension_numbers<[1], [1], [0], [0], [0, 0, 1, 0], [], []>} : vector<16x8xbf16>, vector<16x8xbf16>, vector<16x16xf32> -> vector<16x16xf32>
    %cst_23 = arith.constant 0.353553385 : f32
    %90 = vector.broadcast %cst_23 : f32 to vector<16x16xf32>
    %91 = arith.mulf %89, %90 : vector<16x16xf32>
    %92 = arith.addf %91, %1 : vector<16x16xf32>
    %cst_24 = arith.constant dense<0xFF800000> : vector<16xf32>
    %93 = vector.multi_reduction <maximumf>, %92, %cst_24 [1] : vector<16x16xf32> to vector<16xf32>
    %94 = vector.shape_cast %93 : vector<16xf32> to vector<16x1xf32>
    %95 = vector.broadcast %94 : vector<16x1xf32> to vector<16x16xf32>
    %96 = arith.subf %92, %95 : vector<16x16xf32>
    %97 = math.exp %96 : vector<16x16xf32>
    %cst_25 = arith.constant dense<0.000000e+00> : vector<16xf32>
    %98 = vector.multi_reduction <add>, %97, %cst_25 [1] : vector<16x16xf32> to vector<16xf32>
    %99 = vector.shape_cast %98 : vector<16xf32> to vector<16x1xf32>
    %100 = tpu.reciprocal %99 {approx = true} : vector<16x1xf32> -> vector<16x1xf32>
    %101 = vector.broadcast %100 : vector<16x1xf32> to vector<16x16xf32>
    %102 = arith.mulf %97, %101 : vector<16x16xf32>
    %103 = arith.truncf %102 : vector<16x16xf32> to vector<16x16xbf16>
    %cst_26 = arith.constant dense<0.000000e+00> : vector<16x8xf32>
    %104 = tpu.matmul %103, %88, %cst_26 {dimension_numbers = #tpu.dot_dimension_numbers<[1], [0], [0], [1], [0, 0, 1, 1], [], []>} : vector<16x16xbf16>, vector<16x8xbf16>, vector<16x8xf32> -> vector<16x8xf32>
    %105 = vector.extract_strided_slice %38 {offsets = [0, 24], sizes = [16, 8], strides = [1, 1]} : vector<16x96xf32> to vector<16x8xf32>
    %106 = arith.truncf %105 : vector<16x8xf32> to vector<16x8xbf16>
    %107 = vector.extract_strided_slice %38 {offsets = [0, 56], sizes = [16, 8], strides = [1, 1]} : vector<16x96xf32> to vector<16x8xf32>
    %108 = arith.truncf %107 : vector<16x8xf32> to vector<16x8xbf16>
    %109 = vector.extract_strided_slice %38 {offsets = [0, 88], sizes = [16, 8], strides = [1, 1]} : vector<16x96xf32> to vector<16x8xf32>
    %110 = arith.truncf %109 : vector<16x8xf32> to vector<16x8xbf16>
    %cst_27 = arith.constant dense<0.000000e+00> : vector<16x16xf32>
    %111 = tpu.matmul %106, %108, %cst_27 {dimension_numbers = #tpu.dot_dimension_numbers<[1], [1], [0], [0], [0, 0, 1, 0], [], []>} : vector<16x8xbf16>, vector<16x8xbf16>, vector<16x16xf32> -> vector<16x16xf32>
    %cst_28 = arith.constant 0.353553385 : f32
    %112 = vector.broadcast %cst_28 : f32 to vector<16x16xf32>
    %113 = arith.mulf %111, %112 : vector<16x16xf32>
    %114 = arith.addf %113, %1 : vector<16x16xf32>
    %cst_29 = arith.constant dense<0xFF800000> : vector<16xf32>
    %115 = vector.multi_reduction <maximumf>, %114, %cst_29 [1] : vector<16x16xf32> to vector<16xf32>
    %116 = vector.shape_cast %115 : vector<16xf32> to vector<16x1xf32>
    %117 = vector.broadcast %116 : vector<16x1xf32> to vector<16x16xf32>
    %118 = arith.subf %114, %117 : vector<16x16xf32>
    %119 = math.exp %118 : vector<16x16xf32>
    %cst_30 = arith.constant dense<0.000000e+00> : vector<16xf32>
    %120 = vector.multi_reduction <add>, %119, %cst_30 [1] : vector<16x16xf32> to vector<16xf32>
    %121 = vector.shape_cast %120 : vector<16xf32> to vector<16x1xf32>
    %122 = tpu.reciprocal %121 {approx = true} : vector<16x1xf32> -> vector<16x1xf32>
    %123 = vector.broadcast %122 : vector<16x1xf32> to vector<16x16xf32>
    %124 = arith.mulf %119, %123 : vector<16x16xf32>
    %125 = arith.truncf %124 : vector<16x16xf32> to vector<16x16xbf16>
    %cst_31 = arith.constant dense<0.000000e+00> : vector<16x8xf32>
    %126 = tpu.matmul %125, %110, %cst_31 {dimension_numbers = #tpu.dot_dimension_numbers<[1], [0], [0], [1], [0, 0, 1, 1], [], []>} : vector<16x16xbf16>, vector<16x8xbf16>, vector<16x8xf32> -> vector<16x8xf32>
    %127 = tpu.concatenate %60, %82, %104, %126 in 1 : vector<16x8xf32>, vector<16x8xf32>, vector<16x8xf32>, vector<16x8xf32> -> vector<16x32xf32>
    %128 = arith.truncf %127 : vector<16x32xf32> to vector<16x32xbf16>
    %129 = vector.extract_strided_slice %3 {offsets = [0, 96], sizes = [32, 32], strides = [1, 1]} : vector<32x384xbf16> to vector<32x32xbf16>
    %cst_32 = arith.constant dense<0.000000e+00> : vector<16x32xf32>
    %130 = tpu.matmul %128, %129, %cst_32 {dimension_numbers = #tpu.dot_dimension_numbers<[1], [0], [0], [1], [0, 0, 1, 1], [], []>} : vector<16x32xbf16>, vector<32x32xbf16>, vector<16x32xf32> -> vector<16x32xf32>
    %131 = vector.broadcast %9 : vector<1x32xf32> to vector<16x32xf32>
    %132 = arith.addf %130, %131 : vector<16x32xf32>
    %133 = arith.addf %0, %132 : vector<16x32xf32>
    %cst_33 = arith.constant dense<0.000000e+00> : vector<16xf32>
    %134 = vector.multi_reduction <add>, %133, %cst_33 [1] : vector<16x32xf32> to vector<16xf32>
    %135 = vector.shape_cast %134 : vector<16xf32> to vector<16x1xf32>
    %cst_34 = arith.constant 3.200000e+01 : f32
    %136 = vector.broadcast %cst_34 : f32 to vector<16x1xf32>
    %137 = arith.divf %135, %136 : vector<16x1xf32>
    %138 = vector.broadcast %137 : vector<16x1xf32> to vector<16x32xf32>
    %139 = arith.subf %133, %138 : vector<16x32xf32>
    %140 = arith.mulf %139, %139 : vector<16x32xf32>
    %cst_35 = arith.constant dense<0.000000e+00> : vector<16xf32>
    %141 = vector.multi_reduction <add>, %140, %cst_35 [1] : vector<16x32xf32> to vector<16xf32>
    %142 = vector.shape_cast %141 : vector<16xf32> to vector<16x1xf32>
    %cst_36 = arith.constant 3.200000e+01 : f32
    %143 = vector.broadcast %cst_36 : f32 to vector<16x1xf32>
    %144 = arith.divf %142, %143 : vector<16x1xf32>
    %145 = vector.broadcast %137 : vector<16x1xf32> to vector<16x32xf32>
    %146 = arith.subf %133, %145 : vector<16x32xf32>
    %cst_37 = arith.constant 9.99999974E-6 : f32
    %147 = vector.broadcast %cst_37 : f32 to vector<16x1xf32>
    %148 = arith.addf %144, %147 : vector<16x1xf32>
    %149 = math.rsqrt %148 : vector<16x1xf32>
    %150 = vector.broadcast %149 : vector<16x1xf32> to vector<16x32xf32>
    %151 = arith.mulf %146, %150 : vector<16x32xf32>
    %152 = vector.broadcast %6 : vector<1x32xf32> to vector<16x32xf32>
    %153 = arith.mulf %151, %152 : vector<16x32xf32>
    %154 = vector.broadcast %7 : vector<1x32xf32> to vector<16x32xf32>
    %155 = arith.addf %153, %154 : vector<16x32xf32>
    %156 = arith.truncf %155 : vector<16x32xf32> to vector<16x32xbf16>
    %157 = vector.extract_strided_slice %3 {offsets = [0, 128], sizes = [32, 128], strides = [1, 1]} : vector<32x384xbf16> to vector<32x128xbf16>
    %cst_38 = arith.constant dense<0.000000e+00> : vector<16x128xf32>
    %158 = tpu.matmul %156, %157, %cst_38 {dimension_numbers = #tpu.dot_dimension_numbers<[1], [0], [0], [1], [0, 0, 1, 1], [], []>} : vector<16x32xbf16>, vector<32x128xbf16>, vector<16x128xf32> -> vector<16x128xf32>
    %159 = vector.broadcast %10 : vector<1x128xf32> to vector<16x128xf32>
    %160 = arith.addf %158, %159 : vector<16x128xf32>
    %cst_39 = arith.constant 5.000000e-01 : f32
    %161 = vector.broadcast %cst_39 : f32 to vector<16x128xf32>
    %162 = arith.mulf %161, %160 : vector<16x128xf32>
    %cst_40 = arith.constant 0.707106769 : f32
    %163 = vector.broadcast %cst_40 : f32 to vector<16x128xf32>
    %164 = arith.mulf %160, %163 : vector<16x128xf32>
    %165 = math.erf %164 : vector<16x128xf32>
    %cst_41 = arith.constant 1.000000e+00 : f32
    %166 = vector.broadcast %cst_41 : f32 to vector<16x128xf32>
    %167 = arith.addf %166, %165 : vector<16x128xf32>
    %168 = arith.mulf %162, %167 : vector<16x128xf32>
    %169 = arith.truncf %168 : vector<16x128xf32> to vector<16x128xbf16>
    %170 = vector.extract_strided_slice %3 {offsets = [0, 256], sizes = [32, 128], strides = [1, 1]} : vector<32x384xbf16> to vector<32x128xbf16>
    %cst_42 = arith.constant dense<0.000000e+00> : vector<16x32xf32>
    %171 = tpu.matmul %169, %170, %cst_42 {dimension_numbers = #tpu.dot_dimension_numbers<[1], [1], [0], [0], [0, 0, 1, 0], [], []>} : vector<16x128xbf16>, vector<32x128xbf16>, vector<16x32xf32> -> vector<16x32xf32>
    %172 = vector.broadcast %11 : vector<1x32xf32> to vector<16x32xf32>
    %173 = arith.addf %171, %172 : vector<16x32xf32>
    %174 = arith.addf %133, %173 : vector<16x32xf32>
    %c0_43 = arith.constant 0 : index
    %c0_44 = arith.constant 0 : index
    %175 = vector.load %arg4[%c0_43, %c0_44] : memref<16x32xf32, #tpu.memory_space<vmem>>, vector<16x32xf32>
    tpu.vector_store %arg4[%c0_43, %c0_44], %174 {strides = array<i32>} : memref<16x32xf32, #tpu.memory_space<vmem>>, vector<16x32xf32>,
    return
  }
}

</mosaic_0001>

<llo_original>
// kernel: block_forward.1
$region0: #{block_forward.1}
  #allocation0 [shape = 'u32[]', space=smem, size = 0x4, offset = 0x4, fixed_abs, tag = 'smem constant byte address 0x4 - core index']
  #allocation1 [shape = 'u32[144,128]{1,0:T(1,128)}', space=vmem, size = 0x12000, scoped, tag = 'internal scratch']
  %s0 = inlined_call_operand.hbm [shape: f32[16,32], index: 0, kind: input, shape index: {}]
  %s1 = inlined_call_operand.hbm [shape: f32[16,16], index: 1, kind: input, shape index: {}]
  %s2 = inlined_call_operand.hbm [shape: f32[8,128], index: 2, kind: input, shape index: {}]
  %s3 = inlined_call_operand.hbm [shape: bf16[32,384], index: 3, kind: input, shape index: {}]
  %s4 = inlined_call_operand.hbm [shape: f32[16,32], index: 4, kind: output, shape index: {}]
  %s5 = sld [smem:[#allocation0]]
  $region42: #{block_forward.1} parent=0
    _
  %s7 = ssub.s32 1, %s5
  %s8 = scalar_select 0, %s7, %s5
  $region1: #{block_forward.1} parent=0
    #allocation2 [shape = 'u8[8192]{0}', space=vmem, size = 0x2000, scoped, tag = 'input window, operand 0, single buffered']
    #allocation3 [shape = 's32[1]{0}', space=sflag, size = 0x4, scoped, tag = 'scoped memory for block_forward.1']
    #allocation4 [shape = 's32[1]{0}', space=sflag, size = 0x4, scoped, tag = 'scoped memory for block_forward.1']
    #allocation5 [shape = 'u8[8192]{0}', space=vmem, size = 0x2000, scoped, tag = 'input window, operand 1, single buffered']
    #allocation6 [shape = 's32[1]{0}', space=sflag, size = 0x4, scoped, tag = 'scoped memory for block_forward.1']
    #allocation7 [shape = 'u8[4096]{0}', space=vmem, size = 0x1000, scoped, tag = 'input window, operand 2, single buffered']
    #allocation8 [shape = 'u8[24576]{0}', space=vmem, size = 0x6000, scoped, tag = 'input window, operand 3, single buffered']
    #allocation9 [shape = 's32[1]{0}', space=sflag, size = 0x4, scoped, tag = 'scoped memory for block_forward.1']
    #allocation10 [shape = 'u8[8192]{0}', space=vmem, size = 0x2000, scoped, tag = 'output window, operand 0, single buffered']
    %9 = vsyncpa [#allocation3], 0
    %10 = vsyncpa [#allocation6], 0
    %11 = vsyncpa [#allocation9], 0
    %12 = vsyncpa [#allocation4], 0
    // Predicated region
    $region2: #{block_forward.1} parent=1 // pred_check
      _
    $region3: #{block_forward.1} parent=1 // pred_check_branch
      %14 = sbr.rel (0) target = $region5
    $region4: #{block_forward.1} parent=1 // pred_region
      %s16 = ssub.s32 256, 256
      %17 = vsyncadd [#allocation3], %s16
      %s18 = sshll.u32 [#allocation2], 4
      %s19 = int_to_ptr.vmem [resolvable:$true] %s18
      %24 = dma.hbm_to_vmem [thread:$0]  %s0, 256, %s19, [#allocation3], 128, 128, 8
    $region5: #{block_forward.1} parent=1 // pred_fallthru
      _
    // Predicated region
    $region6: #{block_forward.1} parent=1 // pred_check
      _
    $region7: #{block_forward.1} parent=1 // pred_check_branch
      %26 = sbr.rel (0) target = $region9
    $region8: #{block_forward.1} parent=1 // pred_region
      %s28 = ssub.s32 256, 256
      %29 = vsyncadd [#allocation6], %s28
      %s30 = sshll.u32 [#allocation5], 4
      %s31 = int_to_ptr.vmem [resolvable:$true] %s30
      %36 = dma.hbm_to_vmem [thread:$0]  %s1, 256, %s31, [#allocation6], 128, 128, 8
    $region9: #{block_forward.1} parent=1 // pred_fallthru
      _
    // Predicated region
    $region10: #{block_forward.1} parent=1 // pred_check
      _
    $region11: #{block_forward.1} parent=1 // pred_check_branch
      %38 = sbr.rel (0) target = $region13
    $region12: #{block_forward.1} parent=1 // pred_region
      %s40 = ssub.s32 128, 128
      %41 = vsyncadd [#allocation6], %s40
      %s43 = sshll.u32 [#allocation7], 4
      %s44 = int_to_ptr.vmem [resolvable:$true] %s43
      %46 = dma.hbm_to_vmem [thread:$0]  %s2, 128, %s44, [#allocation6]
    $region13: #{block_forward.1} parent=1 // pred_fallthru
      _
    // Predicated region
    $region14: #{block_forward.1} parent=1 // pred_check
      _
    $region15: #{block_forward.1} parent=1 // pred_check_branch
      %48 = sbr.rel (0) target = $region17
    $region16: #{block_forward.1} parent=1 // pred_region
      %s50 = ssub.s32 768, 768
      %51 = vsyncadd [#allocation9], %s50
      %s52 = sshll.u32 [#allocation8], 4
      %s53 = int_to_ptr.vmem [resolvable:$true] %s52
      %58 = dma.hbm_to_vmem [thread:$0]  %s3, 768, %s53, [#allocation9], 192, 192, 12
    $region17: #{block_forward.1} parent=1 // pred_fallthru
      _
    // Predicated region
    $region18: #{block_forward.1} parent=1 // pred_check
      _
    $region19: #{block_forward.1} parent=1 // pred_check_branch
      %60 = sbr.rel (0) target = $region21
    $region20: #{block_forward.1} parent=1 // pred_region
      %61 = dma.done [#allocation3], 256
    $region21: #{block_forward.1} parent=1 // pred_fallthru
      _
    // Predicated region
    $region22: #{block_forward.1} parent=1 // pred_check
      _
    $region23: #{block_forward.1} parent=1 // pred_check_branch
      %63 = sbr.rel (0) target = $region25
    $region24: #{block_forward.1} parent=1 // pred_region
      %64 = dma.done [#allocation6], 256
    $region25: #{block_forward.1} parent=1 // pred_fallthru
      _
    // Predicated region
    $region26: #{block_forward.1} parent=1 // pred_check
      _
    $region27: #{block_forward.1} parent=1 // pred_check_branch
      %66 = sbr.rel (0) target = $region29
    $region28: #{block_forward.1} parent=1 // pred_region
      %67 = dma.done [#allocation6], 128
    $region29: #{block_forward.1} parent=1 // pred_fallthru
      _
    // Predicated region
    $region30: #{block_forward.1} parent=1 // pred_check
      _
    $region31: #{block_forward.1} parent=1 // pred_check_branch
      %69 = sbr.rel (0) target = $region33
    $region32: #{block_forward.1} parent=1 // pred_region
      %70 = dma.done [#allocation9], 768
    $region33: #{block_forward.1} parent=1 // pred_fallthru
      _
    %v72 = vld [vmem:[#allocation2] sm:$0xff]
    %v73 = vld [vmem:[#allocation2 + $0x8] sm:$0xff]
    %v74 = vld [vmem:[#allocation5] sm:$0xff]
    %v75 = vld [vmem:[#allocation5 + $0x8] sm:$0xff]
    %v76 = vld [vmem:[#allocation7] sm:$0xff]
    %v77 = vld [vmem:[#allocation8] sm:$0xff]
    %v78 = vld [vmem:[#allocation8 + $0x8] sm:$0xf]
    %v79 = vld [vmem:[#allocation8 + $0xc] sm:$0xff]
    %v80 = vld [vmem:[#allocation8 + $0x14] sm:$0xf]
    %v81 = vld [vmem:[#allocation8 + $0x18] sm:$0xff]
    %v82 = vld [vmem:[#allocation8 + $0x20] sm:$0xf]
    %v83 = vld [vmem:[#allocation8 + $0x24] sm:$0xff]
    %v84 = vld [vmem:[#allocation8 + $0x2c] sm:$0xf]
    %vm85 = vcmask 261120
    %v86 = vsel %vm85, %v72, 0.0
    %87 = vadd.xlane.f32.xlu0 %v86
    %v88 = vpop.xlane.xlu0 %87
    %v89 = vsel %vm85, %v73, 0.0
    %90 = vadd.xlane.f32.xlu0 %v89
    %v91 = vpop.xlane.xlu0 %90
    %v92 = vrcp.pop 32.0
    %v93 = vmul.f32 %v88, %v92
    %v94 = vmul.f32 %v91, %v92
    %v95 = vsub.f32 %v72, %v93
    %v96 = vsub.f32 %v73, %v94
    %v97 = vmul.f32 %v95, %v95
    %v98 = vmul.f32 %v96, %v96
    %v99 = vsel %vm85, %v97, 0.0
    %100 = vadd.xlane.f32.xlu0 %v99
    %v101 = vpop.xlane.xlu0 %100
    %v102 = vsel %vm85, %v98, 0.0
    %103 = vadd.xlane.f32.xlu0 %v102
    %v104 = vpop.xlane.xlu0 %103
    %v105 = vmul.f32 %v101, %v92
    %v106 = vmul.f32 %v104, %v92
    %v107 = vadd.f32 %v105, 1e-05
    %v108 = vadd.f32 %v106, 1e-05
    %v109 = vrsqrt.pop %v107
    %v110 = vrsqrt.pop %v108
    %v111 = vmul.f32 %v95, %v109
    %v112 = vmul.f32 %v96, %v110
    %v113 = vlaneseq
    %v114 = vshrl.u32 %v113, 7
    %v115 = vsub.s32 0, %v114
    %v116 = vrot.slane %v76, %v115
    %v117 = vmul.f32 %v111, %v116
    %v118 = vmul.f32 %v112, %v116
    %v119 = vlaneseq
    %v120 = vshrl.u32 %v119, 7
    %v121 = vsub.s32 1, %v120
    %v122 = vrot.slane %v76, %v121
    %v123 = vadd.f32 %v117, %v122
    %v124 = vadd.f32 %v118, %v122
    %v125 = vpack.c.bf16 %v124, %v123
    %v126 = vlaneseq
    %v127 = vshrl.u32 %v126, 7
    %v128 = vsub.s32 4, %v127
    %v129 = vrot.slane %v76, %v128
    %v134 = vunpack.c.l.b16 %v77
    %v135 = vunpack.c.l.b16 %v79
    %v136 = vunpack.c.l.b16 %v81
    %v137 = vunpack.c.l.b16 %v83
    %v138 = vpack.c.b16 %v135, %v134
    %v139 = vpack.c.b16 %v137, %v136
    %v143 = vsel %vm85, %v125, 0
    %145 = vmatprep.subr.bf16.mxu0 0
    %146 = vmatpush1.bf16.msra.mxu0 %v138
    %147 = vmatprep.subr.bf16.mxu0 0
    %148 = vmatpush1.bf16.msra.mxu0 %v139
    %149 = vmatprep.subr.bf16.mxu0 0
    %150 = vmatpush1.bf16.msra.mxu0 0
    %151 = vmatprep.subr.bf16.mxu0 0
    %152 = vmatpush1.bf16.msra.mxu0 0
    %153 = vmatprep.subr.bf16.mxu0 0
    %154 = vmatpush1.bf16.msra.mxu0 0
    %155 = vmatprep.subr.bf16.mxu0 0
    %156 = vmatpush1.bf16.msra.mxu0 0
    %157 = vmatprep.subr.bf16.mxu0 0
    %158 = vmatpush1.bf16.msra.mxu0 0
    %159 = vmatprep.subr.bf16.mxu0 0
    %160 = vmatpush1.bf16.msra.mxu0 0
    %161 = vmatprep.subr.bf16.mxu0 0
    %162 = vmatpush1.bf16.msra.mxu0 0
    %163 = vmatprep.subr.bf16.mxu0 0
    %164 = vmatpush1.bf16.msra.mxu0 0
    %165 = vmatprep.subr.bf16.mxu0 0
    %166 = vmatpush1.bf16.msra.mxu0 0
    %167 = vmatprep.subr.bf16.mxu0 0
    %168 = vmatpush1.bf16.msra.mxu0 0
    %169 = vmatprep.subr.bf16.mxu0 0
    %170 = vmatpush1.bf16.msra.mxu0 0
    %171 = vmatprep.subr.bf16.mxu0 0
    %172 = vmatpush1.bf16.msra.mxu0 0
    %173 = vmatprep.subr.bf16.mxu0 0
    %174 = vmatpush1.bf16.msra.mxu0 0
    %175 = vmatprep.subr.bf16.mxu0 0
    %176 = vmatpush1.bf16.msra.mxu0 0
    %177 = vmatprep.mubr.bf16.mxu0 0
    %178 = vmatmul.mubr.bf16.gmra.mrb[0].mxu0 %v143
    %v179 = vpop.f32.mrb[0].mxu0
    %v180 = vadd.f32 %v129, %v179
    %v181 = vpop.f32.mrb[0].mxu0
    %v182 = vpop.f32.mrb[0].mxu0
    %v183 = vadd.f32 %v129, %v182
    %v184 = vpop.f32.mrb[0].mxu0
    %185 = vdwg.mxu0
    %v186 = vpack.c.bf16 %v183, %v180
    %188 = vrot.lane.b32.xlu0 %v186, 96
    %v189 = vpop.permute.xlu0 %188
    %vm190 = vcmask 64512
    %v192 = vsel %vm190, %v186, 0
    %v195 = vsel %vm190, %v189, 0
    %197 = vmatprep.subr.bf16.mxu0 0
    %198 = vmatpush1.bf16.xpose.msra.mxu0 %v195
    %199 = vmatprep.subr.bf16.mxu0 0
    %200 = vmatpush1.bf16.xpose.msra.mxu0 0
    %201 = vmatprep.subr.bf16.mxu0 0
    %202 = vmatpush1.bf16.xpose.msra.mxu0 0
    %203 = vmatprep.subr.bf16.mxu0 0
    %204 = vmatpush1.bf16.xpose.msra.mxu0 0
    %205 = vmatprep.subr.bf16.mxu0 0
    %206 = vmatpush1.bf16.xpose.msra.mxu0 0
    %207 = vmatprep.subr.bf16.mxu0 0
    %208 = vmatpush1.bf16.xpose.msra.mxu0 0
    %209 = vmatprep.subr.bf16.mxu0 0
    %210 = vmatpush1.bf16.xpose.msra.mxu0 0
    %211 = vmatprep.subr.bf16.mxu0 0
    %212 = vmatpush1.bf16.xpose.msra.mxu0 0
    %213 = vmatprep.subr.bf16.mxu0 0
    %214 = vmatpush1.bf16.xpose.msra.mxu0 0
    %215 = vmatprep.subr.bf16.mxu0 0
    %216 = vmatpush1.bf16.xpose.msra.mxu0 0
    %217 = vmatprep.subr.bf16.mxu0 0
    %218 = vmatpush1.bf16.xpose.msra.mxu0 0
    %219 = vmatprep.subr.bf16.mxu0 0
    %220 = vmatpush1.bf16.xpose.msra.mxu0 0
    %221 = vmatprep.subr.bf16.mxu0 0
    %222 = vmatpush1.bf16.xpose.msra.mxu0 0
    %223 = vmatprep.subr.bf16.mxu0 0
    %224 = vmatpush1.bf16.xpose.msra.mxu0 0
    %225 = vmatprep.subr.bf16.mxu0 0
    %226 = vmatpush1.bf16.xpose.msra.mxu0 0
    %227 = vmatprep.subr.bf16.mxu0 0
    %228 = vmatpush1.bf16.xpose.msra.mxu0 0
    %229 = vmatprep.mubr.bf16.mxu0 0
    %230 = vmatmul.mubr.bf16.gmra.mrb[0].mxu0 %v192
    %v231 = vpop.f32.mrb[0].mxu0
    %v232 = vadd.f32 0.0, %v231
    %v233 = vpop.f32.mrb[0].mxu0
    %v234 = vpop.f32.mrb[0].mxu0
    %v235 = vadd.f32 0.0, %v234
    %v236 = vpop.f32.mrb[0].mxu0
    %237 = vdwg.mxu0
    %v238 = vmul.f32 %v232, 0.35355338
    %v239 = vmul.f32 %v235, 0.35355338
    %v240 = vadd.f32 %v238, %v74
    %v241 = vadd.f32 %v239, %v75
    %vm242 = vcmask 130048
    %v243 = vsel %vm242, %v240, -inf
    %244 = vmax.xlane.f32.xlu0 %v243
    %v245 = vpop.xlane.xlu0 %244
    %v246 = vsel %vm242, %v241, -inf
    %247 = vmax.xlane.f32.xlu0 %v246
    %v248 = vpop.xlane.xlu0 %247
    %v249 = vsub.f32 %v240, %v245
    %v250 = vsub.f32 %v241, %v248
    %v251 = vmul.f32 %v249, 1.442695
    %v252 = vpow.pop %v251
    %v253 = vmul.f32 %v250, 1.442695
    %v254 = vpow.pop %v253
    %v255 = vsel %vm242, %v252, 0.0
    %256 = vadd.xlane.f32.xlu0 %v255
    %v257 = vpop.xlane.xlu0 %256
    %v258 = vsel %vm242, %v254, 0.0
    %259 = vadd.xlane.f32.xlu0 %v258
    %v260 = vpop.xlane.xlu0 %259
    %v261 = vrcp.pop %v257
    %v262 = vrcp.pop %v260
    %v263 = vmul.f32 %v252, %v261
    %v264 = vmul.f32 %v254, %v262
    %v265 = vpack.c.bf16 %v264, %v263
    %266 = vrot.lane.b32.xlu0 %v186, 64
    %v267 = vpop.permute.xlu0 %266
    %v270 = vsel %vm242, %v265, 0
    %272 = vmatprep.subr.bf16.mxu0 0
    %273 = vmatpush1.bf16.msra.mxu0 %v267
    %274 = vmatprep.subr.bf16.mxu0 0
    %275 = vmatpush1.bf16.msra.mxu0 0
    %276 = vmatprep.subr.bf16.mxu0 0
    %277 = vmatpush1.bf16.msra.mxu0 0
    %278 = vmatprep.subr.bf16.mxu0 0
    %279 = vmatpush1.bf16.msra.mxu0 0
    %280 = vmatprep.subr.bf16.mxu0 0
    %281 = vmatpush1.bf16.msra.mxu0 0
    %282 = vmatprep.subr.bf16.mxu0 0
    %283 = vmatpush1.bf16.msra.mxu0 0
    %284 = vmatprep.subr.bf16.mxu0 0
    %285 = vmatpush1.bf16.msra.mxu0 0
    %286 = vmatprep.subr.bf16.mxu0 0
    %287 = vmatpush1.bf16.msra.mxu0 0
    %288 = vmatprep.subr.bf16.mxu0 0
    %289 = vmatpush1.bf16.msra.mxu0 0
    %290 = vmatprep.subr.bf16.mxu0 0
    %291 = vmatpush1.bf16.msra.mxu0 0
    %292 = vmatprep.subr.bf16.mxu0 0
    %293 = vmatpush1.bf16.msra.mxu0 0
    %294 = vmatprep.subr.bf16.mxu0 0
    %295 = vmatpush1.bf16.msra.mxu0 0
    %296 = vmatprep.subr.bf16.mxu0 0
    %297 = vmatpush1.bf16.msra.mxu0 0
    %298 = vmatprep.subr.bf16.mxu0 0
    %299 = vmatpush1.bf16.msra.mxu0 0
    %300 = vmatprep.subr.bf16.mxu0 0
    %301 = vmatpush1.bf16.msra.mxu0 0
    %302 = vmatprep.subr.bf16.mxu0 0
    %303 = vmatpush1.bf16.msra.mxu0 0
    %304 = vmatprep.mubr.bf16.mxu0 0
    %305 = vmatmul.mubr.bf16.gmra.mrb[0].mxu0 %v270
    %v306 = vpop.f32.mrb[0].mxu0
    %v307 = vadd.f32 0.0, %v306
    %v308 = vpop.f32.mrb[0].mxu0
    %v309 = vpop.f32.mrb[0].mxu0
    %v310 = vadd.f32 0.0, %v309
    %v311 = vpop.f32.mrb[0].mxu0
    %312 = vdwg.mxu0
    %313 = vrot.lane.b32.xlu0 %v186, 120
    %v314 = vpop.permute.xlu0 %313
    %315 = vrot.lane.b32.xlu0 %v186, 88
    %v316 = vpop.permute.xlu0 %315
    %v318 = vsel %vm190, %v314, 0
    %v321 = vsel %vm190, %v316, 0
    %323 = vmatprep.subr.bf16.mxu0 0
    %324 = vmatpush1.bf16.xpose.msra.mxu0 %v321
    %325 = vmatprep.subr.bf16.mxu0 0
    %326 = vmatpush1.bf16.xpose.msra.mxu0 0
    %327 = vmatprep.subr.bf16.mxu0 0
    %328 = vmatpush1.bf16.xpose.msra.mxu0 0
    %329 = vmatprep.subr.bf16.mxu0 0
    %330 = vmatpush1.bf16.xpose.msra.mxu0 0
    %331 = vmatprep.subr.bf16.mxu0 0
    %332 = vmatpush1.bf16.xpose.msra.mxu0 0
    %333 = vmatprep.subr.bf16.mxu0 0
    %334 = vmatpush1.bf16.xpose.msra.mxu0 0
    %335 = vmatprep.subr.bf16.mxu0 0
    %336 = vmatpush1.bf16.xpose.msra.mxu0 0
    %337 = vmatprep.subr.bf16.mxu0 0
    %338 = vmatpush1.bf16.xpose.msra.mxu0 0
    %339 = vmatprep.subr.bf16.mxu0 0
    %340 = vmatpush1.bf16.xpose.msra.mxu0 0
    %341 = vmatprep.subr.bf16.mxu0 0
    %342 = vmatpush1.bf16.xpose.msra.mxu0 0
    %343 = vmatprep.subr.bf16.mxu0 0
    %344 = vmatpush1.bf16.xpose.msra.mxu0 0
    %345 = vmatprep.subr.bf16.mxu0 0
    %346 = vmatpush1.bf16.xpose.msra.mxu0 0
    %347 = vmatprep.subr.bf16.mxu0 0
    %348 = vmatpush1.bf16.xpose.msra.mxu0 0
    %349 = vmatprep.subr.bf16.mxu0 0
    %350 = vmatpush1.bf16.xpose.msra.mxu0 0
    %351 = vmatprep.subr.bf16.mxu0 0
    %352 = vmatpush1.bf16.xpose.msra.mxu0 0
    %353 = vmatprep.subr.bf16.mxu0 0
    %354 = vmatpush1.bf16.xpose.msra.mxu0 0
    %355 = vmatprep.mubr.bf16.mxu0 0
    %356 = vmatmul.mubr.bf16.gmra.mrb[0].mxu0 %v318
    %v357 = vpop.f32.mrb[0].mxu0
    %v358 = vadd.f32 0.0, %v357
    %v359 = vpop.f32.mrb[0].mxu0
    %v360 = vpop.f32.mrb[0].mxu0
    %v361 = vadd.f32 0.0, %v360
    %v362 = vpop.f32.mrb[0].mxu0
    %363 = vdwg.mxu0
    %v364 = vmul.f32 %v358, 0.35355338
    %v365 = vmul.f32 %v361, 0.35355338
    %v366 = vadd.f32 %v364, %v74
    %v367 = vadd.f32 %v365, %v75
    %v368 = vsel %vm242, %v366, -inf
    %369 = vmax.xlane.f32.xlu0 %v368
    %v370 = vpop.xlane.xlu0 %369
    %v371 = vsel %vm242, %v367, -inf
    %372 = vmax.xlane.f32.xlu0 %v371
    %v373 = vpop.xlane.xlu0 %372
    %v374 = vsub.f32 %v366, %v370
    %v375 = vsub.f32 %v367, %v373
    %v376 = vmul.f32 %v374, 1.442695
    %v377 = vpow.pop %v376
    %v378 = vmul.f32 %v375, 1.442695
    %v379 = vpow.pop %v378
    %v380 = vsel %vm242, %v377, 0.0
    %381 = vadd.xlane.f32.xlu0 %v380
    %v382 = vpop.xlane.xlu0 %381
    %v383 = vsel %vm242, %v379, 0.0
    %384 = vadd.xlane.f32.xlu0 %v383
    %v385 = vpop.xlane.xlu0 %384
    %v386 = vrcp.pop %v382
    %v387 = vrcp.pop %v385
    %v388 = vmul.f32 %v377, %v386
    %v389 = vmul.f32 %v379, %v387
    %v390 = vpack.c.bf16 %v389, %v388
    %391 = vrot.lane.b32.xlu0 %v186, 56
    %v392 = vpop.permute.xlu0 %391
    %v395 = vsel %vm242, %v390, 0
    %397 = vmatprep.subr.bf16.mxu0 0
    %398 = vmatpush1.bf16.msra.mxu0 %v392
    %399 = vmatprep.subr.bf16.mxu0 0
    %400 = vmatpush1.bf16.msra.mxu0 0
    %401 = vmatprep.subr.bf16.mxu0 0
    %402 = vmatpush1.bf16.msra.mxu0 0
    %403 = vmatprep.subr.bf16.mxu0 0
    %404 = vmatpush1.bf16.msra.mxu0 0
    %405 = vmatprep.subr.bf16.mxu0 0
    %406 = vmatpush1.bf16.msra.mxu0 0
    %407 = vmatprep.subr.bf16.mxu0 0
    %408 = vmatpush1.bf16.msra.mxu0 0
    %409 = vmatprep.subr.bf16.mxu0 0
    %410 = vmatpush1.bf16.msra.mxu0 0
    %411 = vmatprep.subr.bf16.mxu0 0
    %412 = vmatpush1.bf16.msra.mxu0 0
    %413 = vmatprep.subr.bf16.mxu0 0
    %414 = vmatpush1.bf16.msra.mxu0 0
    %415 = vmatprep.subr.bf16.mxu0 0
    %416 = vmatpush1.bf16.msra.mxu0 0
    %417 = vmatprep.subr.bf16.mxu0 0
    %418 = vmatpush1.bf16.msra.mxu0 0
    %419 = vmatprep.subr.bf16.mxu0 0
    %420 = vmatpush1.bf16.msra.mxu0 0
    %421 = vmatprep.subr.bf16.mxu0 0
    %422 = vmatpush1.bf16.msra.mxu0 0
    %423 = vmatprep.subr.bf16.mxu0 0
    %424 = vmatpush1.bf16.msra.mxu0 0
    %425 = vmatprep.subr.bf16.mxu0 0
    %426 = vmatpush1.bf16.msra.mxu0 0
    %427 = vmatprep.subr.bf16.mxu0 0
    %428 = vmatpush1.bf16.msra.mxu0 0
    %429 = vmatprep.mubr.bf16.mxu0 0
    %430 = vmatmul.mubr.bf16.gmra.mrb[0].mxu0 %v395
    %v431 = vpop.f32.mrb[0].mxu0
    %v432 = vadd.f32 0.0, %v431
    %v433 = vpop.f32.mrb[0].mxu0
    %v434 = vpop.f32.mrb[0].mxu0
    %v435 = vadd.f32 0.0, %v434
    %v436 = vpop.f32.mrb[0].mxu0
    %437 = vdwg.mxu0
    %438 = vrot.lane.b32.xlu0 %v186, 112
    %v439 = vpop.permute.xlu0 %438
    %440 = vrot.lane.b32.xlu0 %v186, 80
    %v441 = vpop.permute.xlu0 %440
    %v443 = vsel %vm190, %v439, 0
    %v446 = vsel %vm190, %v441, 0
    %448 = vmatprep.subr.bf16.mxu0 0
    %449 = vmatpush1.bf16.xpose.msra.mxu0 %v446
    %450 = vmatprep.subr.bf16.mxu0 0
    %451 = vmatpush1.bf16.xpose.msra.mxu0 0
    %452 = vmatprep.subr.bf16.mxu0 0
    %453 = vmatpush1.bf16.xpose.msra.mxu0 0
    %454 = vmatprep.subr.bf16.mxu0 0
    %455 = vmatpush1.bf16.xpose.msra.mxu0 0
    %456 = vmatprep.subr.bf16.mxu0 0
    %457 = vmatpush1.bf16.xpose.msra.mxu0 0
    %458 = vmatprep.subr.bf16.mxu0 0
    %459 = vmatpush1.bf16.xpose.msra.mxu0 0
    %460 = vmatprep.subr.bf16.mxu0 0
    %461 = vmatpush1.bf16.xpose.msra.mxu0 0
    %462 = vmatprep.subr.bf16.mxu0 0
    %463 = vmatpush1.bf16.xpose.msra.mxu0 0
    %464 = vmatprep.subr.bf16.mxu0 0
    %465 = vmatpush1.bf16.xpose.msra.mxu0 0
    %466 = vmatprep.subr.bf16.mxu0 0
    %467 = vmatpush1.bf16.xpose.msra.mxu0 0
    %468 = vmatprep.subr.bf16.mxu0 0
    %469 = vmatpush1.bf16.xpose.msra.mxu0 0
    %470 = vmatprep.subr.bf16.mxu0 0
    %471 = vmatpush1.bf16.xpose.msra.mxu0 0
    %472 = vmatprep.subr.bf16.mxu0 0
    %473 = vmatpush1.bf16.xpose.msra.mxu0 0
    %474 = vmatprep.subr.bf16.mxu0 0
    %475 = vmatpush1.bf16.xpose.msra.mxu0 0
    %476 = vmatprep.subr.bf16.mxu0 0
    %477 = vmatpush1.bf16.xpose.msra.mxu0 0
    %478 = vmatprep.subr.bf16.mxu0 0
    %479 = vmatpush1.bf16.xpose.msra.mxu0 0
    %480 = vmatprep.mubr.bf16.mxu0 0
    %481 = vmatmul.mubr.bf16.gmra.mrb[0].mxu0 %v443
    %v482 = vpop.f32.mrb[0].mxu0
    %v483 = vadd.f32 0.0, %v482
    %v484 = vpop.f32.mrb[0].mxu0
    %v485 = vpop.f32.mrb[0].mxu0
    %v486 = vadd.f32 0.0, %v485
    %v487 = vpop.f32.mrb[0].mxu0
    %488 = vdwg.mxu0
    %v489 = vmul.f32 %v483, 0.35355338
    %v490 = vmul.f32 %v486, 0.35355338
    %v491 = vadd.f32 %v489, %v74
    %v492 = vadd.f32 %v490, %v75
    %v493 = vsel %vm242, %v491, -inf
    %494 = vmax.xlane.f32.xlu0 %v493
    %v495 = vpop.xlane.xlu0 %494
    %v496 = vsel %vm242, %v492, -inf
    %497 = vmax.xlane.f32.xlu0 %v496
    %v498 = vpop.xlane.xlu0 %497
    %v499 = vsub.f32 %v491, %v495
    %v500 = vsub.f32 %v492, %v498
    %v501 = vmul.f32 %v499, 1.442695
    %v502 = vpow.pop %v501
    %v503 = vmul.f32 %v500, 1.442695
    %v504 = vpow.pop %v503
    %v505 = vsel %vm242, %v502, 0.0
    %506 = vadd.xlane.f32.xlu0 %v505
    %v507 = vpop.xlane.xlu0 %506
    %v508 = vsel %vm242, %v504, 0.0
    %509 = vadd.xlane.f32.xlu0 %v508
    %v510 = vpop.xlane.xlu0 %509
    %v511 = vrcp.pop %v507
    %v512 = vrcp.pop %v510
    %v513 = vmul.f32 %v502, %v511
    %v514 = vmul.f32 %v504, %v512
    %v515 = vpack.c.bf16 %v514, %v513
    %516 = vrot.lane.b32.xlu0 %v186, 48
    %v517 = vpop.permute.xlu0 %516
    %v520 = vsel %vm242, %v515, 0
    %522 = vmatprep.subr.bf16.mxu0 0
    %523 = vmatpush1.bf16.msra.mxu0 %v517
    %524 = vmatprep.subr.bf16.mxu0 0
    %525 = vmatpush1.bf16.msra.mxu0 0
    %526 = vmatprep.subr.bf16.mxu0 0
    %527 = vmatpush1.bf16.msra.mxu0 0
    %528 = vmatprep.subr.bf16.mxu0 0
    %529 = vmatpush1.bf16.msra.mxu0 0
    %530 = vmatprep.subr.bf16.mxu0 0
    %531 = vmatpush1.bf16.msra.mxu0 0
    %532 = vmatprep.subr.bf16.mxu0 0
    %533 = vmatpush1.bf16.msra.mxu0 0
    %534 = vmatprep.subr.bf16.mxu0 0
    %535 = vmatpush1.bf16.msra.mxu0 0
    %536 = vmatprep.subr.bf16.mxu0 0
    %537 = vmatpush1.bf16.msra.mxu0 0
    %538 = vmatprep.subr.bf16.mxu0 0
    %539 = vmatpush1.bf16.msra.mxu0 0
    %540 = vmatprep.subr.bf16.mxu0 0
    %541 = vmatpush1.bf16.msra.mxu0 0
    %542 = vmatprep.subr.bf16.mxu0 0
    %543 = vmatpush1.bf16.msra.mxu0 0
    %544 = vmatprep.subr.bf16.mxu0 0
    %545 = vmatpush1.bf16.msra.mxu0 0
    %546 = vmatprep.subr.bf16.mxu0 0
    %547 = vmatpush1.bf16.msra.mxu0 0
    %548 = vmatprep.subr.bf16.mxu0 0
    %549 = vmatpush1.bf16.msra.mxu0 0
    %550 = vmatprep.subr.bf16.mxu0 0
    %551 = vmatpush1.bf16.msra.mxu0 0
    %552 = vmatprep.subr.bf16.mxu0 0
    %553 = vmatpush1.bf16.msra.mxu0 0
    %554 = vmatprep.mubr.bf16.mxu0 0
    %555 = vmatmul.mubr.bf16.gmra.mrb[0].mxu0 %v520
    %v556 = vpop.f32.mrb[0].mxu0
    %v557 = vadd.f32 0.0, %v556
    %v558 = vpop.f32.mrb[0].mxu0
    %v559 = vpop.f32.mrb[0].mxu0
    %v560 = vadd.f32 0.0, %v559
    %v561 = vpop.f32.mrb[0].mxu0
    %562 = vdwg.mxu0
    %563 = vrot.lane.b32.xlu0 %v186, 104
    %v564 = vpop.permute.xlu0 %563
    %565 = vrot.lane.b32.xlu0 %v186, 72
    %v566 = vpop.permute.xlu0 %565
    %v568 = vsel %vm190, %v564, 0
    %v571 = vsel %vm190, %v566, 0
    %573 = vmatprep.subr.bf16.mxu0 0
    %574 = vmatpush1.bf16.xpose.msra.mxu0 %v571
    %575 = vmatprep.subr.bf16.mxu0 0
    %576 = vmatpush1.bf16.xpose.msra.mxu0 0
    %577 = vmatprep.subr.bf16.mxu0 0
    %578 = vmatpush1.bf16.xpose.msra.mxu0 0
    %579 = vmatprep.subr.bf16.mxu0 0
    %580 = vmatpush1.bf16.xpose.msra.mxu0 0
    %581 = vmatprep.subr.bf16.mxu0 0
    %582 = vmatpush1.bf16.xpose.msra.mxu0 0
    %583 = vmatprep.subr.bf16.mxu0 0
    %584 = vmatpush1.bf16.xpose.msra.mxu0 0
    %585 = vmatprep.subr.bf16.mxu0 0
    %586 = vmatpush1.bf16.xpose.msra.mxu0 0
    %587 = vmatprep.subr.bf16.mxu0 0
    %588 = vmatpush1.bf16.xpose.msra.mxu0 0
    %589 = vmatprep.subr.bf16.mxu0 0
    %590 = vmatpush1.bf16.xpose.msra.mxu0 0
    %591 = vmatprep.subr.bf16.mxu0 0
    %592 = vmatpush1.bf16.xpose.msra.mxu0 0
    %593 = vmatprep.subr.bf16.mxu0 0
    %594 = vmatpush1.bf16.xpose.msra.mxu0 0
    %595 = vmatprep.subr.bf16.mxu0 0
    %596 = vmatpush1.bf16.xpose.msra.mxu0 0
    %597 = vmatprep.subr.bf16.mxu0 0
    %598 = vmatpush1.bf16.xpose.msra.mxu0 0
    %599 = vmatprep.subr.bf16.mxu0 0
    %600 = vmatpush1.bf16.xpose.msra.mxu0 0
    %601 = vmatprep.subr.bf16.mxu0 0
    %602 = vmatpush1.bf16.xpose.msra.mxu0 0
    %603 = vmatprep.subr.bf16.mxu0 0
    %604 = vmatpush1.bf16.xpose.msra.mxu0 0
    %605 = vmatprep.mubr.bf16.mxu0 0
    %606 = vmatmul.mubr.bf16.gmra.mrb[0].mxu0 %v568
    %v607 = vpop.f32.mrb[0].mxu0
    %v608 = vadd.f32 0.0, %v607
    %v609 = vpop.f32.mrb[0].mxu0
    %v610 = vpop.f32.mrb[0].mxu0
    %v611 = vadd.f32 0.0, %v610
    %v612 = vpop.f32.mrb[0].mxu0
    %613 = vdwg.mxu0
    %v614 = vmul.f32 %v608, 0.35355338
    %v615 = vmul.f32 %v611, 0.35355338
    %v616 = vadd.f32 %v614, %v74
    %v617 = vadd.f32 %v615, %v75
    %v618 = vsel %vm242, %v616, -inf
    %619 = vmax.xlane.f32.xlu0 %v618
    %v620 = vpop.xlane.xlu0 %619
    %v621 = vsel %vm242, %v617, -inf
    %622 = vmax.xlane.f32.xlu0 %v621
    %v623 = vpop.xlane.xlu0 %622
    %v624 = vsub.f32 %v616, %v620
    %v625 = vsub.f32 %v617, %v623
    %v626 = vmul.f32 %v624, 1.442695
    %v627 = vpow.pop %v626
    %v628 = vmul.f32 %v625, 1.442695
    %v629 = vpow.pop %v628
    %v630 = vsel %vm242, %v627, 0.0
    %631 = vadd.xlane.f32.xlu0 %v630
    %v632 = vpop.xlane.xlu0 %631
    %v633 = vsel %vm242, %v629, 0.0
    %634 = vadd.xlane.f32.xlu0 %v633
    %v635 = vpop.xlane.xlu0 %634
    %v636 = vrcp.pop %v632
    %v637 = vrcp.pop %v635
    %v638 = vmul.f32 %v627, %v636
    %v639 = vmul.f32 %v629, %v637
    %v640 = vpack.c.bf16 %v639, %v638
    %641 = vrot.lane.b32.xlu0 %v186, 40
    %v642 = vpop.permute.xlu0 %641
    %v645 = vsel %vm242, %v640, 0
    %647 = vmatprep.subr.bf16.mxu0 0
    %648 = vmatpush1.bf16.msra.mxu0 %v642
    %649 = vmatprep.subr.bf16.mxu0 0
    %650 = vmatpush1.bf16.msra.mxu0 0
    %651 = vmatprep.subr.bf16.mxu0 0
    %652 = vmatpush1.bf16.msra.mxu0 0
    %653 = vmatprep.subr.bf16.mxu0 0
    %654 = vmatpush1.bf16.msra.mxu0 0
    %655 = vmatprep.subr.bf16.mxu0 0
    %656 = vmatpush1.bf16.msra.mxu0 0
    %657 = vmatprep.subr.bf16.mxu0 0
    %658 = vmatpush1.bf16.msra.mxu0 0
    %659 = vmatprep.subr.bf16.mxu0 0
    %660 = vmatpush1.bf16.msra.mxu0 0
    %661 = vmatprep.subr.bf16.mxu0 0
    %662 = vmatpush1.bf16.msra.mxu0 0
    %663 = vmatprep.subr.bf16.mxu0 0
    %664 = vmatpush1.bf16.msra.mxu0 0
    %665 = vmatprep.subr.bf16.mxu0 0
    %666 = vmatpush1.bf16.msra.mxu0 0
    %667 = vmatprep.subr.bf16.mxu0 0
    %668 = vmatpush1.bf16.msra.mxu0 0
    %669 = vmatprep.subr.bf16.mxu0 0
    %670 = vmatpush1.bf16.msra.mxu0 0
    %671 = vmatprep.subr.bf16.mxu0 0
    %672 = vmatpush1.bf16.msra.mxu0 0
    %673 = vmatprep.subr.bf16.mxu0 0
    %674 = vmatpush1.bf16.msra.mxu0 0
    %675 = vmatprep.subr.bf16.mxu0 0
    %676 = vmatpush1.bf16.msra.mxu0 0
    %677 = vmatprep.subr.bf16.mxu0 0
    %678 = vmatpush1.bf16.msra.mxu0 0
    %679 = vmatprep.mubr.bf16.mxu0 0
    %680 = vmatmul.mubr.bf16.gmra.mrb[0].mxu0 %v645
    %v681 = vpop.f32.mrb[0].mxu0
    %v682 = vadd.f32 0.0, %v681
    %v683 = vpop.f32.mrb[0].mxu0
    %v684 = vpop.f32.mrb[0].mxu0
    %v685 = vadd.f32 0.0, %v684
    %v686 = vpop.f32.mrb[0].mxu0
    %687 = vdwg.mxu0
    %690 = vrot.lane.b32.xlu0 %v432, 8
    %v691 = vpop.permute.xlu0 %690
    %692 = vrot.lane.b32.xlu0 %v435, 8
    %v693 = vpop.permute.xlu0 %692
    %698 = vrot.lane.b32.xlu0 %v557, 16
    %v699 = vpop.permute.xlu0 %698
    %700 = vrot.lane.b32.xlu0 %v560, 16
    %v701 = vpop.permute.xlu0 %700
    %706 = vrot.lane.b32.xlu0 %v682, 24
    %v707 = vpop.permute.xlu0 %706
    %708 = vrot.lane.b32.xlu0 %v685, 24
    %v709 = vpop.permute.xlu0 %708
    %v712 = vsel %vm190, %v307, %v691
    %v713 = vsel %vm190, %v310, %v693
    %v714 = vsel %vm242, %v712, %v699
    %v715 = vsel %vm242, %v713, %v701
    %vm716 = vcmask 195584
    %v717 = vsel %vm716, %v714, %v707
    %v718 = vsel %vm716, %v715, %v709
    %v719 = vpack.c.bf16 %v718, %v717
    %v720 = vlaneseq
    %v721 = vshrl.u32 %v720, 7
    %v722 = vsub.s32 5, %v721
    %v723 = vrot.slane %v76, %v722
    %724 = vrot.lane.b32.xlu0 %v138, 32
    %v725 = vpop.permute.xlu0 %724
    %726 = vrot.lane.b32.xlu0 %v139, 32
    %v727 = vpop.permute.xlu0 %726
    %v731 = vsel %vm85, %v719, 0
    %733 = vmatprep.subr.bf16.mxu0 0
    %734 = vmatpush1.bf16.msra.mxu0 %v725
    %735 = vmatprep.subr.bf16.mxu0 0
    %736 = vmatpush1.bf16.msra.mxu0 %v727
    %737 = vmatprep.subr.bf16.mxu0 0
    %738 = vmatpush1.bf16.msra.mxu0 0
    %739 = vmatprep.subr.bf16.mxu0 0
    %740 = vmatpush1.bf16.msra.mxu0 0
    %741 = vmatprep.subr.bf16.mxu0 0
    %742 = vmatpush1.bf16.msra.mxu0 0
    %743 = vmatprep.subr.bf16.mxu0 0
    %744 = vmatpush1.bf16.msra.mxu0 0
    %745 = vmatprep.subr.bf16.mxu0 0
    %746 = vmatpush1.bf16.msra.mxu0 0
    %747 = vmatprep.subr.bf16.mxu0 0
    %748 = vmatpush1.bf16.msra.mxu0 0
    %749 = vmatprep.subr.bf16.mxu0 0
    %750 = vmatpush1.bf16.msra.mxu0 0
    %751 = vmatprep.subr.bf16.mxu0 0
    %752 = vmatpush1.bf16.msra.mxu0 0
    %753 = vmatprep.subr.bf16.mxu0 0
    %754 = vmatpush1.bf16.msra.mxu0 0
    %755 = vmatprep.subr.bf16.mxu0 0
    %756 = vmatpush1.bf16.msra.mxu0 0
    %757 = vmatprep.subr.bf16.mxu0 0
    %758 = vmatpush1.bf16.msra.mxu0 0
    %759 = vmatprep.subr.bf16.mxu0 0
    %760 = vmatpush1.bf16.msra.mxu0 0
    %761 = vmatprep.subr.bf16.mxu0 0
    %762 = vmatpush1.bf16.msra.mxu0 0
    %763 = vmatprep.subr.bf16.mxu0 0
    %764 = vmatpush1.bf16.msra.mxu0 0
    %765 = vmatprep.mubr.bf16.mxu0 0
    %766 = vmatmul.mubr.bf16.gmra.mrb[0].mxu0 %v731
    %v767 = vpop.f32.mrb[0].mxu0
    %v768 = vadd.f32 %v723, %v767
    %v769 = vpop.f32.mrb[0].mxu0
    %v770 = vpop.f32.mrb[0].mxu0
    %v771 = vadd.f32 %v723, %v770
    %v772 = vpop.f32.mrb[0].mxu0
    %773 = vdwg.mxu0
    %v774 = vadd.f32 %v72, %v768
    %v775 = vadd.f32 %v73, %v771
    %v776 = vsel %vm85, %v774, 0.0
    %777 = vadd.xlane.f32.xlu0 %v776
    %v778 = vpop.xlane.xlu0 %777
    %v779 = vsel %vm85, %v775, 0.0
    %780 = vadd.xlane.f32.xlu0 %v779
    %v781 = vpop.xlane.xlu0 %780
    %v782 = vmul.f32 %v778, %v92
    %v783 = vmul.f32 %v781, %v92
    %v784 = vsub.f32 %v774, %v782
    %v785 = vsub.f32 %v775, %v783
    %v786 = vmul.f32 %v784, %v784
    %v787 = vmul.f32 %v785, %v785
    %v788 = vsel %vm85, %v786, 0.0
    %789 = vadd.xlane.f32.xlu0 %v788
    %v790 = vpop.xlane.xlu0 %789
    %v791 = vsel %vm85, %v787, 0.0
    %792 = vadd.xlane.f32.xlu0 %v791
    %v793 = vpop.xlane.xlu0 %792
    %v794 = vmul.f32 %v790, %v92
    %v795 = vmul.f32 %v793, %v92
    %v796 = vadd.f32 %v794, 1e-05
    %v797 = vadd.f32 %v795, 1e-05
    %v798 = vrsqrt.pop %v796
    %v799 = vrsqrt.pop %v797
    %v800 = vmul.f32 %v784, %v798
    %v801 = vmul.f32 %v785, %v799
    %v802 = vlaneseq
    %v803 = vshrl.u32 %v802, 7
    %v804 = vsub.s32 2, %v803
    %v805 = vrot.slane %v76, %v804
    %v806 = vmul.f32 %v800, %v805
    %v807 = vmul.f32 %v801, %v805
    %v808 = vlaneseq
    %v809 = vshrl.u32 %v808, 7
    %v810 = vsub.s32 3, %v809
    %v811 = vrot.slane %v76, %v810
    %v812 = vadd.f32 %v806, %v811
    %v813 = vadd.f32 %v807, %v811
    %v814 = vpack.c.bf16 %v813, %v812
    %v815 = vlaneseq
    %v816 = vshrl.u32 %v815, 7
    %v817 = vsub.s32 6, %v816
    %v818 = vrot.slane %v76, %v817
    %v819 = vunpack.c.h.b16 %v77
    %v820 = vunpack.c.h.b16 %v79
    %v821 = vunpack.c.h.b16 %v81
    %v822 = vunpack.c.h.b16 %v83
    %v823 = vpack.c.b16 %v820, %v819
    %v824 = vpack.c.b16 %v822, %v821
    %v828 = vsel %vm85, %v814, 0
    %830 = vmatprep.subr.bf16.mxu0 0
    %831 = vmatpush1.bf16.msra.mxu0 %v823
    %832 = vmatprep.subr.bf16.mxu0 0
    %833 = vmatpush1.bf16.msra.mxu0 %v824
    %834 = vmatprep.subr.bf16.mxu0 0
    %835 = vmatpush1.bf16.msra.mxu0 0
    %836 = vmatprep.subr.bf16.mxu0 0
    %837 = vmatpush1.bf16.msra.mxu0 0
    %838 = vmatprep.subr.bf16.mxu0 0
    %839 = vmatpush1.bf16.msra.mxu0 0
    %840 = vmatprep.subr.bf16.mxu0 0
    %841 = vmatpush1.bf16.msra.mxu0 0
    %842 = vmatprep.subr.bf16.mxu0 0
    %843 = vmatpush1.bf16.msra.mxu0 0
    %844 = vmatprep.subr.bf16.mxu0 0
    %845 = vmatpush1.bf16.msra.mxu0 0
    %846 = vmatprep.subr.bf16.mxu0 0
    %847 = vmatpush1.bf16.msra.mxu0 0
    %848 = vmatprep.subr.bf16.mxu0 0
    %849 = vmatpush1.bf16.msra.mxu0 0
    %850 = vmatprep.subr.bf16.mxu0 0
    %851 = vmatpush1.bf16.msra.mxu0 0
    %852 = vmatprep.subr.bf16.mxu0 0
    %853 = vmatpush1.bf16.msra.mxu0 0
    %854 = vmatprep.subr.bf16.mxu0 0
    %855 = vmatpush1.bf16.msra.mxu0 0
    %856 = vmatprep.subr.bf16.mxu0 0
    %857 = vmatpush1.bf16.msra.mxu0 0
    %858 = vmatprep.subr.bf16.mxu0 0
    %859 = vmatpush1.bf16.msra.mxu0 0
    %860 = vmatprep.subr.bf16.mxu0 0
    %861 = vmatpush1.bf16.msra.mxu0 0
    %862 = vmatprep.mubr.bf16.mxu0 0
    %863 = vmatmul.mubr.bf16.gmra.mrb[0].mxu0 %v828
    %v864 = vpop.f32.mrb[0].mxu0
    %v865 = vadd.f32 %v818, %v864
    %v866 = vpop.f32.mrb[0].mxu0
    %v867 = vpop.f32.mrb[0].mxu0
    %v868 = vadd.f32 %v818, %v867
    %v869 = vpop.f32.mrb[0].mxu0
    %870 = vdwg.mxu0
    %v871 = vmul.f32 %v865, 0.5
    %v872 = vmul.f32 %v868, 0.5
    %v873 = vmul.f32 %v865, 0.70710677
    %v874 = vmul.f32 %v868, 0.70710677
    %v875 = verf.f32.pop %v873
    %v876 = verf.f32.pop %v874
    %v877 = vadd.f32 %v875, 1.0
    %v878 = vadd.f32 %v876, 1.0
    %v879 = vmul.f32 %v871, %v877
    %v880 = vmul.f32 %v872, %v878
    %v881 = vpack.c.bf16 %v880, %v879
    %v882 = vlaneseq
    %v883 = vshrl.u32 %v882, 7
    %v884 = vsub.s32 7, %v883
    %v885 = vrot.slane %v76, %v884
    %v890 = vunpack.c.l.b16 %v78
    %v891 = vunpack.c.l.b16 %v80
    %v892 = vunpack.c.l.b16 %v82
    %v893 = vunpack.c.l.b16 %v84
    %v894 = vpack.c.b16 %v891, %v890
    %v895 = vpack.c.b16 %v893, %v892
    %898 = vmatprep.subr.bf16.mxu0 0
    %899 = vmatpush1.bf16.xpose.msra.mxu0 %v894
    %900 = vmatprep.subr.bf16.mxu0 0
    %901 = vmatpush1.bf16.xpose.msra.mxu0 %v895
    %902 = vmatprep.subr.bf16.mxu0 0
    %903 = vmatpush1.bf16.xpose.msra.mxu0 0
    %904 = vmatprep.subr.bf16.mxu0 0
    %905 = vmatpush1.bf16.xpose.msra.mxu0 0
    %906 = vmatprep.subr.bf16.mxu0 0
    %907 = vmatpush1.bf16.xpose.msra.mxu0 0
    %908 = vmatprep.subr.bf16.mxu0 0
    %909 = vmatpush1.bf16.xpose.msra.mxu0 0
    %910 = vmatprep.subr.bf16.mxu0 0
    %911 = vmatpush1.bf16.xpose.msra.mxu0 0
    %912 = vmatprep.subr.bf16.mxu0 0
    %913 = vmatpush1.bf16.xpose.msra.mxu0 0
    %914 = vmatprep.subr.bf16.mxu0 0
    %915 = vmatpush1.bf16.xpose.msra.mxu0 0
    %916 = vmatprep.subr.bf16.mxu0 0
    %917 = vmatpush1.bf16.xpose.msra.mxu0 0
    %918 = vmatprep.subr.bf16.mxu0 0
    %919 = vmatpush1.bf16.xpose.msra.mxu0 0
    %920 = vmatprep.subr.bf16.mxu0 0
    %921 = vmatpush1.bf16.xpose.msra.mxu0 0
    %922 = vmatprep.subr.bf16.mxu0 0
    %923 = vmatpush1.bf16.xpose.msra.mxu0 0
    %924 = vmatprep.subr.bf16.mxu0 0
    %925 = vmatpush1.bf16.xpose.msra.mxu0 0
    %926 = vmatprep.subr.bf16.mxu0 0
    %927 = vmatpush1.bf16.xpose.msra.mxu0 0
    %928 = vmatprep.subr.bf16.mxu0 0
    %929 = vmatpush1.bf16.xpose.msra.mxu0 0
    %930 = vmatprep.mubr.bf16.mxu0 0
    %931 = vmatmul.mubr.bf16.gmra.mrb[0].mxu0 %v881
    %v932 = vpop.f32.mrb[0].mxu0
    %v933 = vadd.f32 %v885, %v932
    %v934 = vpop.f32.mrb[0].mxu0
    %v935 = vpop.f32.mrb[0].mxu0
    %v936 = vadd.f32 %v885, %v935
    %v937 = vpop.f32.mrb[0].mxu0
    %938 = vdwg.mxu0
    %v939 = vadd.f32 %v774, %v933
    %v940 = vadd.f32 %v775, %v936
    %941 = vst.msk [vmem:[#allocation10] sm:$0xff] %vm85, %v939
    %942 = vst.msk [vmem:[#allocation10 + $0x8] sm:$0xff] %vm85, %v940
    // Predicated region
    $region34: #{block_forward.1} parent=1 // pred_check
      _
    $region35: #{block_forward.1} parent=1 // pred_check_branch
      %944 = sbr.rel (0) target = $region37
    $region36: #{block_forward.1} parent=1 // pred_region
      %s946 = ssub.s32 256, 256
      %947 = vsyncadd [#allocation4], %s946
      %s948 = sshll.u32 [#allocation10], 4
      %s949 = int_to_ptr.vmem [resolvable:$true] %s948
      %954 = dma.vmem_to_hbm [thread:$0]  %s949, 256, %s4, [#allocation4], 128, 128, 8
    $region37: #{block_forward.1} parent=1 // pred_fallthru
      _
    // Predicated region
    $region38: #{block_forward.1} parent=1 // pred_check
      _
    $region39: #{block_forward.1} parent=1 // pred_check_branch
      %956 = sbr.rel (0) target = $region41
    $region40: #{block_forward.1} parent=1 // pred_region
      %957 = dma.done [#allocation4], 256
    $region41: #{block_forward.1} parent=1 // pred_fallthru
      _
    %958 = vsyncpa [#allocation3], 1
    %959 = vsyncpa [#allocation6], 1
    %960 = vsyncpa [#allocation9], 1
    %961 = vsyncpa [#allocation4], 1

</llo_original>
